<compile_context>
chip_gen: v7x
topology: tpu7x:2x2x1
jax: 0.10.0
libtpu: 0.0.40
codegen_flags: <defaults>
</compile_context>

<pallas_src>
import jax
import jax.numpy as jnp
import numpy as np
from jax.experimental import pallas as pl
from jax.experimental.pallas import tpu as pltpu

# ---------------- problem sizes (small, consistent with the module) ----------
B = 2             # batch
SEQ = 2           # aim_seq_len
K = 16            # codebook size
D = 8             # vqvae.quantizer.D
IN_DIM = 32       # flattened observation dim fed to vqvae.encoder
ENC_H = 64        # vqvae encoder hidden width
ENC_OUT = 16      # vqvae.encoder.enc[-1].out_features
LABEL_N = 10      # nn.Embedding(10, 8)
LABEL_D = 8
POLICY_IN = SEQ * D + LABEL_D + ENC_OUT            # 40
POLICY_H = 128
PRED_H = 64
INTENT_H = 64
H_ALL = POLICY_H + PRED_H + INTENT_H               # 256 fused hidden width
OUT_POLICY = SEQ * K                               # 32
OUT_PRED = SEQ * K                                 # 32
OUT_INTENT = 2
OUT_PAD = 128                                      # lane-dense output slab


# ---------------- fused Pallas kernel -----------------------------------------
def agent_b_fused_kernel(
    aim_ref, lab_ref,                      # SMEM scalar-prefetch: (B,SEQ), (B,)
    x_ref,                                 # (B, IN_DIM) f32
    emb_bd_ref, lab_emb_ref,               # (SEQ*K, SEQ*D), (LABEL_N, LABEL_D)
    ew1_ref, eb1_ref, ew2_ref, eb2_ref,    # vqvae.encoder MLP
    w1a_ref, w1l_ref, w1z_ref, b1_ref,     # fused 3-head layer 1 (row-split)
    w2_ref, b2_ref,                        # fused layer 2 (block-diag, lane-padded)
    out_ref,                               # (B, OUT_PAD)
):
    b_sz = x_ref.shape[0]
    seq_k = emb_bd_ref.shape[0]            # SEQ * K
    n_lab = lab_emb_ref.shape[0]
    seq = aim_ref.shape[1]
    k = seq_k // seq

    # --- one-hots built from SMEM scalars (VPU compares only, no gathers) ---
    lane_a = jax.lax.broadcasted_iota(jnp.int32, (b_sz, seq_k), 1)
    sub_a = jax.lax.broadcasted_iota(jnp.int32, (b_sz, seq_k), 0)
    aim_mask = jnp.zeros((b_sz, seq_k), jnp.bool_)
    for bb in range(b_sz):                 # static, tiny B
        for s in range(seq):               # static, SEQ == 2
            tgt = aim_ref[bb, s] + s * k
            aim_mask = aim_mask | ((lane_a == tgt) & (sub_a == bb))
    onehot_aim = aim_mask.astype(jnp.float32)                    # (B, SEQ*K)

    lane_l = jax.lax.broadcasted_iota(jnp.int32, (b_sz, n_lab), 1)
    sub_l = jax.lax.broadcasted_iota(jnp.int32, (b_sz, n_lab), 0)
    lab_mask = jnp.zeros((b_sz, n_lab), jnp.bool_)
    for bb in range(b_sz):
        lab_mask = lab_mask | ((lane_l == lab_ref[bb]) & (sub_l == bb))
    onehot_lab = lab_mask.astype(jnp.float32)                    # (B, LABEL_N)

    # --- both embedding lookups as single MXU matmuls ---
    aim_flat = jnp.dot(onehot_aim, emb_bd_ref[...],
                       preferred_element_type=jnp.float32)        # (B, SEQ*D)
    label_feat = jnp.dot(onehot_lab, lab_emb_ref[...],
                         preferred_element_type=jnp.float32)      # (B, LABEL_D)

    # --- vqvae.encoder: Linear -> ReLU -> Linear ---
    h = jnp.dot(x_ref[...], ew1_ref[...],
                preferred_element_type=jnp.float32) + eb1_ref[...]
    h = jnp.maximum(h, 0.0)
    z_e = jnp.dot(h, ew2_ref[...],
                  preferred_element_type=jnp.float32) + eb2_ref[...]

    # --- fused 3-head layer 1: concat replaced by sum of partial matmuls ---
    h_all = (jnp.dot(aim_flat, w1a_ref[...], preferred_element_type=jnp.float32)
             + jnp.dot(label_feat, w1l_ref[...], preferred_element_type=jnp.float32)
             + jnp.dot(z_e, w1z_ref[...], preferred_element_type=jnp.float32)
             + b1_ref[...])
    h_all = jnp.maximum(h_all, 0.0)                               # (B, H_ALL)

    # --- fused layer 2: block-diagonal W2, lane-dense (B, 128) output ---
    out_ref[...] = jnp.dot(h_all, w2_ref[...],
                           preferred_element_type=jnp.float32) + b2_ref[...]


# ---------------- wrapper -------------------------------------------------------
def agent_b_forward_all(aim_idx, label_idx, x, packed):
    """Runs all three AgentB modes in one fused pallas_call.

    Returns (policy_logits (B,SEQ,K), opponent_aim_logits (B,SEQ,K), intent (B,2)).
    """
    b = x.shape[0]
    tensor_args = (
        x,
        packed["emb_bd"], packed["lab"],
        packed["ew1"], packed["eb1"], packed["ew2"], packed["eb2"],
        packed["w1_aim"], packed["w1_lab"], packed["w1_ze"], packed["b1_all"],
        packed["w2_all"], packed["b2_all"],
    )
    # whole-array VMEM blocks (total footprint << VMEM on v5e/v6e/v7x; no tiling)
    in_specs = [pl.BlockSpec(a.shape, lambda i, *_: (0, 0)) for a in tensor_args]
    out_spec = pl.BlockSpec((b, OUT_PAD), lambda i, *_: (0, 0))

    grid_spec = pltpu.PrefetchScalarGridSpec(
        num_scalar_prefetch=2,             # aim_idx, label_idx -> SMEM
        grid=(1,),
        in_specs=in_specs,
        out_specs=out_spec,
    )
    out = pl.pallas_call(
        agent_b_fused_kernel,
        out_shape=jax.ShapeDtypeStruct((b, OUT_PAD), jnp.float32),
        grid_spec=grid_spec,
        compiler_params=pltpu.CompilerParams(dimension_semantics=("arbitrary",)),
    )(aim_idx.astype(jnp.int32), label_idx.astype(jnp.int32), *tensor_args)

    policy = out[:, :OUT_POLICY].reshape(-1, SEQ, K)
    pred = out[:, OUT_POLICY:OUT_POLICY + OUT_PRED].reshape(-1, SEQ, K)
    intent = out[:, OUT_POLICY + OUT_PRED:OUT_POLICY + OUT_PRED + OUT_INTENT]
    return policy, pred, intent


def agent_b_forward(aim_idx, label_idx, x, packed, mode="policy"):
    """Per-mode API kept for compatibility (all heads cost ~nothing fused)."""
    policy, pred, intent = agent_b_forward_all(aim_idx, label_idx, x, packed)
    if mode == "policy":
        return policy
    if mode == "predict_opponent_aim":
        return pred
    if mode == "decode_opponent_intent":
        return intent
    raise NotImplementedError(f"Mode '{mode}' not implemented for AgentB.")


# ---------------- deterministic parameter init + one-time packing --------------
def _uniform(key, shape, fan_in):
    bound = 1.0 / np.sqrt(fan_in)
    return jax.random.uniform(key, shape, jnp.float32, -bound, bound)


def init_params(key):
    ks = jax.random.split(key, 20)
    return {
        "emb": jax.random.normal(ks[0], (K, D), jnp.float32),
        "lab": jax.random.normal(ks[1], (LABEL_N, LABEL_D), jnp.float32),
        # vqvae.encoder: Linear(IN_DIM, ENC_H) -> ReLU -> Linear(ENC_H, ENC_OUT)
        "ew1": _uniform(ks[2], (IN_DIM, ENC_H), IN_DIM),
        "eb1": _uniform(ks[3], (1, ENC_H), IN_DIM),
        "ew2": _uniform(ks[4], (ENC_H, ENC_OUT), ENC_H),
        "eb2": _uniform(ks[5], (1, ENC_OUT), ENC_H),
        # policy_net: Linear(POLICY_IN,128) -> ReLU -> Linear(128, SEQ*K)
        "pw1": _uniform(ks[6], (POLICY_IN, POLICY_H), POLICY_IN),
        "pb1": _uniform(ks[7], (1, POLICY_H), POLICY_IN),
        "pw2": _uniform(ks[8], (POLICY_H, SEQ * K), POLICY_H),
        "pb2": _uniform(ks[9], (1, SEQ * K), POLICY_H),
        # opponent_aim_predictor: Linear(POLICY_IN,64) -> ReLU -> Linear(64, SEQ*K)
        "ow1": _uniform(ks[10], (POLICY_IN, PRED_H), POLICY_IN),
        "ob1": _uniform(ks[11], (1, PRED_H), POLICY_IN),
        "ow2": _uniform(ks[12], (PRED_H, SEQ * K), PRED_H),
        "ob2": _uniform(ks[13], (1, SEQ * K), PRED_H),
        # intent_decoder_B: Linear(POLICY_IN,64) -> ReLU -> Linear(64, 2)
        "iw1": _uniform(ks[14], (POLICY_IN, INTENT_H), POLICY_IN),
        "ib1": _uniform(ks[15], (1, INTENT_H), POLICY_IN),
        "iw2": _uniform(ks[16], (INTENT_H, 2), INTENT_H),
        "ib2": _uniform(ks[17], (1, 2), INTENT_H),
    }


def pack_params(p):
    """One-time host-side packing (not per forward call)."""
    # block-diagonal embedding table: one (B,SEQ*K)@(SEQ*K,SEQ*D) lookup matmul
    emb_bd = jnp.zeros((SEQ * K, SEQ * D), jnp.float32)
    for s in range(SEQ):
        emb_bd = emb_bd.at[s * K:(s + 1) * K, s * D:(s + 1) * D].set(p["emb"])

    # fused layer-1 weights: hstack of the three heads' W1 / b1
    w1_all = jnp.concatenate([p["pw1"], p["ow1"], p["iw1"]], axis=1)   # (40, 256)
    b1_all = jnp.concatenate([p["pb1"], p["ob1"], p["ib1"]], axis=1)   # (1, 256)
    w1_aim = w1_all[:SEQ * D]                                          # (16, 256)
    w1_lab = w1_all[SEQ * D:SEQ * D + LABEL_D]                         # (8, 256)
    w1_ze = w1_all[SEQ * D + LABEL_D:]                                 # (16, 256)

    # fused layer-2 weights: block-diagonal, output lane-padded to 128
    w2_all = jnp.zeros((H_ALL, OUT_PAD), jnp.float32)
    w2_all = w2_all.at[0:POLICY_H, 0:OUT_POLICY].set(p["pw2"])
    w2_all = w2_all.at[POLICY_H:POLICY_H + PRED_H,
                       OUT_POLICY:OUT_POLICY + OUT_PRED].set(p["ow2"])
    w2_all = w2_all.at[POLICY_H + PRED_H:,
                       OUT_POLICY + OUT_PRED:OUT_POLICY + OUT_PRED + OUT_INTENT].set(p["iw2"])
    b2_all = jnp.zeros((1, OUT_PAD), jnp.float32)
    b2_all = b2_all.at[:, 0:OUT_POLICY].set(p["pb2"])
    b2_all = b2_all.at[:, OUT_POLICY:OUT_POLICY + OUT_PRED].set(p["ob2"])
    b2_all = b2_all.at[:, OUT_POLICY + OUT_PRED:OUT_POLICY + OUT_PRED + OUT_INTENT].set(p["ib2"])

    return {
        "emb_bd": emb_bd, "lab": p["lab"],
        "ew1": p["ew1"], "eb1": p["eb1"], "ew2": p["ew2"], "eb2": p["eb2"],
        "w1_aim": w1_aim, "w1_lab": w1_lab, "w1_ze": w1_ze, "b1_all": b1_all,
        "w2_all": w2_all, "b2_all": b2_all,
    }


# ---------------- plain-JAX reference (original, unpacked params) ---------------
def reference_forward(aim_idx, label_idx, x, p, mode="policy"):
    emb = p["emb"][aim_idx]                               # (B, SEQ, D)
    lab = p["lab"][label_idx]                             # (B, 8)
    h = jax.nn.relu(x @ p["ew1"] + p["eb1"][0])
    z_e = h @ p["ew2"] + p["eb2"][0]
    comb = jnp.concatenate([emb.reshape(emb.shape[0], -1), lab, z_e], axis=1)
    if mode == "policy":
        w1, b1, w2, b2 = p["pw1"], p["pb1"], p["pw2"], p["pb2"]
    elif mode == "predict_opponent_aim":
        w1, b1, w2, b2 = p["ow1"], p["ob1"], p["ow2"], p["ob2"]
    else:
        w1, b1, w2, b2 = p["iw1"], p["ib1"], p["iw2"], p["ib2"]
    out = jax.nn.relu(comb @ w1 + b1[0]) @ w2 + b2[0]
    if mode in ("policy", "predict_opponent_aim"):
        return out.reshape(-1, SEQ, K)
    return out


# ---------------- main -----------------------------------------------------------
if __name__ == "__main__":
    key = jax.random.PRNGKey(0)
    k_par, k_aim, k_lab, k_x = jax.random.split(key, 4)

    params = init_params(k_par)
    packed = pack_params(params)          # one-time packing, not per call

    aim_idx = jax.random.randint(k_aim, (B, SEQ), 0, K, dtype=jnp.int32)
    label_idx = jax.random.randint(k_lab, (B,), 0, LABEL_N, dtype=jnp.int32)
    x = jax.random.normal(k_x, (B, IN_DIM), jnp.float32)

    # one fused kernel call produces all three modes
    logits_policy, logits_pred, intent = agent_b_forward_all(
        aim_idx, label_idx, x, packed)
    jax.block_until_ready((logits_policy, logits_pred, intent))

    # sanity check vs plain-JAX reference (original unpacked params)
    for mode, got in (("policy", logits_policy),
                      ("predict_opponent_aim", logits_pred),
                      ("decode_opponent_intent", intent)):
        want = reference_forward(aim_idx, label_idx, x, params, mode)
        np.testing.assert_allclose(np.asarray(got), np.asarray(want),
                                   rtol=1e-5, atol=1e-5)

    assert logits_policy.shape == (B, SEQ, K)
    assert logits_pred.shape == (B, SEQ, K)
    assert intent.shape == (B, 2)

    # TODO(synk): for large batches, add a batch-tile grid with
    # dimension_semantics=("parallel",) (2 TCs on v7x) and a vectorized
    # (VMEM) one-hot build instead of the static per-row SMEM loop.
    print("KERNEL_OK")
</pallas_src>

<mosaic_0001>
module attributes {stable_mosaic.version = 11 : i64} {
  func.func @agent_b_fused_kernel(%arg0: i32, %arg1: memref<2x2xi32, #tpu.memory_space<smem>>, %arg2: memref<2xi32, #tpu.memory_space<smem>>, %arg3: memref<2x32xf32, #tpu.memory_space<vmem>>, %arg4: memref<32x16xf32, #tpu.memory_space<vmem>>, %arg5: memref<10x8xf32, #tpu.memory_space<vmem>>, %arg6: memref<32x64xf32, #tpu.memory_space<vmem>>, %arg7: memref<1x64xf32, #tpu.memory_space<vmem>>, %arg8: memref<64x16xf32, #tpu.memory_space<vmem>>, %arg9: memref<1x16xf32, #tpu.memory_space<vmem>>, %arg10: memref<16x256xf32, #tpu.memory_space<vmem>>, %arg11: memref<8x256xf32, #tpu.memory_space<vmem>>, %arg12: memref<16x256xf32, #tpu.memory_space<vmem>>, %arg13: memref<1x256xf32, #tpu.memory_space<vmem>>, %arg14: memref<256x128xf32, #tpu.memory_space<vmem>>, %arg15: memref<1x128xf32, #tpu.memory_space<vmem>>, %arg16: memref<2x128xf32, #tpu.memory_space<vmem>>) attributes {dimension_semantics = [#tpu.dimension_semantics<arbitrary>], iteration_bounds = array<i64: 1>, scalar_prefetch = 2 : i64, scratch_operands = 0 : i64, tpu.core_type = #tpu.core_type<tc>, window_params = [{pipeline_mode = #tpu.pipeline_mode<synchronous>, transform_indices = @transform_0, window_bounds = array<i64: 2, 32>}, {pipeline_mode = #tpu.pipeline_mode<synchronous>, transform_indices = @transform_1, window_bounds = array<i64: 32, 16>}, {pipeline_mode = #tpu.pipeline_mode<synchronous>, transform_indices = @transform_2, window_bounds = array<i64: 10, 8>}, {pipeline_mode = #tpu.pipeline_mode<synchronous>, transform_indices = @transform_3, window_bounds = array<i64: 32, 64>}, {pipeline_mode = #tpu.pipeline_mode<synchronous>, transform_indices = @transform_4, window_bounds = array<i64: 1, 64>}, {pipeline_mode = #tpu.pipeline_mode<synchronous>, transform_indices = @transform_5, window_bounds = array<i64: 64, 16>}, {pipeline_mode = #tpu.pipeline_mode<synchronous>, transform_indices = @transform_6, window_bounds = array<i64: 1, 16>}, {pipeline_mode = #tpu.pipeline_mode<synchronous>, transform_indices = @transform_7, window_bounds = array<i64: 16, 256>}, {pipeline_mode = #tpu.pipeline_mode<synchronous>, transform_indices = @transform_8, window_bounds = array<i64: 8, 256>}, {pipeline_mode = #tpu.pipeline_mode<synchronous>, transform_indices = @transform_9, window_bounds = array<i64: 16, 256>}, {pipeline_mode = #tpu.pipeline_mode<synchronous>, transform_indices = @transform_10, window_bounds = array<i64: 1, 256>}, {pipeline_mode = #tpu.pipeline_mode<synchronous>, transform_indices = @transform_11, window_bounds = array<i64: 256, 128>}, {pipeline_mode = #tpu.pipeline_mode<synchronous>, transform_indices = @transform_12, window_bounds = array<i64: 1, 128>}, {pipeline_mode = #tpu.pipeline_mode<synchronous>, transform_indices = @transform_13, window_bounds = array<i64: 2, 128>}]} {
    %0 = tpu.iota {dimensions = array<i32: 1>} : vector<2x32xi32>
    %1 = tpu.iota {dimensions = array<i32: 0>} : vector<2x32xi32>
    %false = arith.constant false
    %2 = vector.broadcast %false : i1 to vector<2x32xi1>
    %c0 = arith.constant 0 : index
    %c0_0 = arith.constant 0 : index
    %3 = memref.load %arg1[%c0, %c0_0] : memref<2x2xi32, #tpu.memory_space<smem>>
    %c0_i32 = arith.constant 0 : i32
    %4 = arith.addi %3, %c0_i32 : i32
    %5 = vector.broadcast %4 : i32 to vector<2x32xi32>
    %6 = arith.cmpi eq, %0, %5 : vector<2x32xi32>
    %c0_i32_1 = arith.constant 0 : i32
    %7 = vector.broadcast %c0_i32_1 : i32 to vector<2x32xi32>
    %8 = arith.cmpi eq, %1, %7 : vector<2x32xi32>
    %9 = arith.andi %6, %8 : vector<2x32xi1>
    %10 = arith.ori %2, %9 : vector<2x32xi1>
    %c0_2 = arith.constant 0 : index
    %c1 = arith.constant 1 : index
    %11 = memref.load %arg1[%c0_2, %c1] : memref<2x2xi32, #tpu.memory_space<smem>>
    %c16_i32 = arith.constant 16 : i32
    %12 = arith.addi %11, %c16_i32 : i32
    %13 = vector.broadcast %12 : i32 to vector<2x32xi32>
    %14 = arith.cmpi eq, %0, %13 : vector<2x32xi32>
    %c0_i32_3 = arith.constant 0 : i32
    %15 = vector.broadcast %c0_i32_3 : i32 to vector<2x32xi32>
    %16 = arith.cmpi eq, %1, %15 : vector<2x32xi32>
    %17 = arith.andi %14, %16 : vector<2x32xi1>
    %18 = arith.ori %10, %17 : vector<2x32xi1>
    %c1_4 = arith.constant 1 : index
    %c0_5 = arith.constant 0 : index
    %19 = memref.load %arg1[%c1_4, %c0_5] : memref<2x2xi32, #tpu.memory_space<smem>>
    %c0_i32_6 = arith.constant 0 : i32
    %20 = arith.addi %19, %c0_i32_6 : i32
    %21 = vector.broadcast %20 : i32 to vector<2x32xi32>
    %22 = arith.cmpi eq, %0, %21 : vector<2x32xi32>
    %c1_i32 = arith.constant 1 : i32
    %23 = vector.broadcast %c1_i32 : i32 to vector<2x32xi32>
    %24 = arith.cmpi eq, %1, %23 : vector<2x32xi32>
    %25 = arith.andi %22, %24 : vector<2x32xi1>
    %26 = arith.ori %18, %25 : vector<2x32xi1>
    %c1_7 = arith.constant 1 : index
    %c1_8 = arith.constant 1 : index
    %27 = memref.load %arg1[%c1_7, %c1_8] : memref<2x2xi32, #tpu.memory_space<smem>>
    %c16_i32_9 = arith.constant 16 : i32
    %28 = arith.addi %27, %c16_i32_9 : i32
    %29 = vector.broadcast %28 : i32 to vector<2x32xi32>
    %30 = arith.cmpi eq, %0, %29 : vector<2x32xi32>
    %c1_i32_10 = arith.constant 1 : i32
    %31 = vector.broadcast %c1_i32_10 : i32 to vector<2x32xi32>
    %32 = arith.cmpi eq, %1, %31 : vector<2x32xi32>
    %33 = arith.andi %30, %32 : vector<2x32xi1>
    %34 = arith.ori %26, %33 : vector<2x32xi1>
    %35 = arith.extui %34 : vector<2x32xi1> to vector<2x32xi32>
    %36 = arith.sitofp %35 : vector<2x32xi32> to vector<2x32xf32>
    %37 = tpu.iota {dimensions = array<i32: 1>} : vector<2x10xi32>
    %38 = tpu.iota {dimensions = array<i32: 0>} : vector<2x10xi32>
    %false_11 = arith.constant false
    %39 = vector.broadcast %false_11 : i1 to vector<2x10xi1>
    %c0_12 = arith.constant 0 : index
    %40 = memref.load %arg2[%c0_12] : memref<2xi32, #tpu.memory_space<smem>>
    %41 = vector.broadcast %40 : i32 to vector<2x10xi32>
    %42 = arith.cmpi eq, %37, %41 : vector<2x10xi32>
    %c0_i32_13 = arith.constant 0 : i32
    %43 = vector.broadcast %c0_i32_13 : i32 to vector<2x10xi32>
    %44 = arith.cmpi eq, %38, %43 : vector<2x10xi32>
    %45 = arith.andi %42, %44 : vector<2x10xi1>
    %46 = arith.ori %39, %45 : vector<2x10xi1>
    %c1_14 = arith.constant 1 : index
    %47 = memref.load %arg2[%c1_14] : memref<2xi32, #tpu.memory_space<smem>>
    %48 = vector.broadcast %47 : i32 to vector<2x10xi32>
    %49 = arith.cmpi eq, %37, %48 : vector<2x10xi32>
    %c1_i32_15 = arith.constant 1 : i32
    %50 = vector.broadcast %c1_i32_15 : i32 to vector<2x10xi32>
    %51 = arith.cmpi eq, %38, %50 : vector<2x10xi32>
    %52 = arith.andi %49, %51 : vector<2x10xi1>
    %53 = arith.ori %46, %52 : vector<2x10xi1>
    %54 = arith.extui %53 : vector<2x10xi1> to vector<2x10xi32>
    %55 = arith.sitofp %54 : vector<2x10xi32> to vector<2x10xf32>
    %c0_16 = arith.constant 0 : index
    %c0_17 = arith.constant 0 : index
    %56 = vector.load %arg4[%c0_16, %c0_17] : memref<32x16xf32, #tpu.memory_space<vmem>>, vector<32x16xf32>
    %cst = arith.constant dense<0.000000e+00> : vector<2x16xf32>
    %57 = tpu.matmul %36, %56, %cst {dimension_numbers = #tpu.dot_dimension_numbers<[1], [0], [0], [1], [0, 0, 1, 1], [], []>} : vector<2x32xf32>, vector<32x16xf32>, vector<2x16xf32> -> vector<2x16xf32>
    %c0_18 = arith.constant 0 : index
    %c0_19 = arith.constant 0 : index
    %58 = vector.load %arg5[%c0_18, %c0_19] : memref<10x8xf32, #tpu.memory_space<vmem>>, vector<10x8xf32>
    %cst_20 = arith.constant dense<0.000000e+00> : vector<2x8xf32>
    %59 = tpu.matmul %55, %58, %cst_20 {dimension_numbers = #tpu.dot_dimension_numbers<[1], [0], [0], [1], [0, 0, 1, 1], [], []>} : vector<2x10xf32>, vector<10x8xf32>, vector<2x8xf32> -> vector<2x8xf32>
    %c0_21 = arith.constant 0 : index
    %c0_22 = arith.constant 0 : index
    %60 = vector.load %arg3[%c0_21, %c0_22] : memref<2x32xf32, #tpu.memory_space<vmem>>, vector<2x32xf32>
    %c0_23 = arith.constant 0 : index
    %c0_24 = arith.constant 0 : index
    %61 = vector.load %arg6[%c0_23, %c0_24] : memref<32x64xf32, #tpu.memory_space<vmem>>, vector<32x64xf32>
    %cst_25 = arith.constant dense<0.000000e+00> : vector<2x64xf32>
    %62 = tpu.matmul %60, %61, %cst_25 {dimension_numbers = #tpu.dot_dimension_numbers<[1], [0], [0], [1], [0, 0, 1, 1], [], []>} : vector<2x32xf32>, vector<32x64xf32>, vector<2x64xf32> -> vector<2x64xf32>
    %c0_26 = arith.constant 0 : index
    %c0_27 = arith.constant 0 : index
    %63 = vector.load %arg7[%c0_26, %c0_27] : memref<1x64xf32, #tpu.memory_space<vmem>>, vector<1x64xf32>
    %64 = vector.broadcast %63 : vector<1x64xf32> to vector<2x64xf32>
    %65 = arith.addf %62, %64 : vector<2x64xf32>
    %cst_28 = arith.constant 0.000000e+00 : f32
    %66 = vector.broadcast %cst_28 : f32 to vector<2x64xf32>
    %67 = arith.maximumf %65, %66 : vector<2x64xf32>
    %c0_29 = arith.constant 0 : index
    %c0_30 = arith.constant 0 : index
    %68 = vector.load %arg8[%c0_29, %c0_30] : memref<64x16xf32, #tpu.memory_space<vmem>>, vector<64x16xf32>
    %cst_31 = arith.constant dense<0.000000e+00> : vector<2x16xf32>
    %69 = tpu.matmul %67, %68, %cst_31 {dimension_numbers = #tpu.dot_dimension_numbers<[1], [0], [0], [1], [0, 0, 1, 1], [], []>} : vector<2x64xf32>, vector<64x16xf32>, vector<2x16xf32> -> vector<2x16xf32>
    %c0_32 = arith.constant 0 : index
    %c0_33 = arith.constant 0 : index
    %70 = vector.load %arg9[%c0_32, %c0_33] : memref<1x16xf32, #tpu.memory_space<vmem>>, vector<1x16xf32>
    %71 = vector.broadcast %70 : vector<1x16xf32> to vector<2x16xf32>
    %72 = arith.addf %69, %71 : vector<2x16xf32>
    %c0_34 = arith.constant 0 : index
    %c0_35 = arith.constant 0 : index
    %73 = vector.load %arg10[%c0_34, %c0_35] : memref<16x256xf32, #tpu.memory_space<vmem>>, vector<16x256xf32>
    %cst_36 = arith.constant dense<0.000000e+00> : vector<2x256xf32>
    %74 = tpu.matmul %57, %73, %cst_36 {dimension_numbers = #tpu.dot_dimension_numbers<[1], [0], [0], [1], [0, 0, 1, 1], [], []>} : vector<2x16xf32>, vector<16x256xf32>, vector<2x256xf32> -> vector<2x256xf32>
    %c0_37 = arith.constant 0 : index
    %c0_38 = arith.constant 0 : index
    %75 = vector.load %arg11[%c0_37, %c0_38] : memref<8x256xf32, #tpu.memory_space<vmem>>, vector<8x256xf32>
    %cst_39 = arith.constant dense<0.000000e+00> : vector<2x256xf32>
    %76 = tpu.matmul %59, %75, %cst_39 {dimension_numbers = #tpu.dot_dimension_numbers<[1], [0], [0], [1], [0, 0, 1, 1], [], []>} : vector<2x8xf32>, vector<8x256xf32>, vector<2x256xf32> -> vector<2x256xf32>
    %77 = arith.addf %74, %76 : vector<2x256xf32>
    %c0_40 = arith.constant 0 : index
    %c0_41 = arith.constant 0 : index
    %78 = vector.load %arg12[%c0_40, %c0_41] : memref<16x256xf32, #tpu.memory_space<vmem>>, vector<16x256xf32>
    %cst_42 = arith.constant dense<0.000000e+00> : vector<2x256xf32>
    %79 = tpu.matmul %72, %78, %cst_42 {dimension_numbers = #tpu.dot_dimension_numbers<[1], [0], [0], [1], [0, 0, 1, 1], [], []>} : vector<2x16xf32>, vector<16x256xf32>, vector<2x256xf32> -> vector<2x256xf32>
    %80 = arith.addf %77, %79 : vector<2x256xf32>
    %c0_43 = arith.constant 0 : index
    %c0_44 = arith.constant 0 : index
    %81 = vector.load %arg13[%c0_43, %c0_44] : memref<1x256xf32, #tpu.memory_space<vmem>>, vector<1x256xf32>
    %82 = vector.broadcast %81 : vector<1x256xf32> to vector<2x256xf32>
    %83 = arith.addf %80, %82 : vector<2x256xf32>
    %cst_45 = arith.constant 0.000000e+00 : f32
    %84 = vector.broadcast %cst_45 : f32 to vector<2x256xf32>
    %85 = arith.maximumf %83, %84 : vector<2x256xf32>
    %c0_46 = arith.constant 0 : index
    %c0_47 = arith.constant 0 : index
    %86 = vector.load %arg14[%c0_46, %c0_47] : memref<256x128xf32, #tpu.memory_space<vmem>>, vector<256x128xf32>
    %cst_48 = arith.constant dense<0.000000e+00> : vector<2x128xf32>
    %87 = tpu.matmul %85, %86, %cst_48 {dimension_numbers = #tpu.dot_dimension_numbers<[1], [0], [0], [1], [0, 0, 1, 1], [], []>} : vector<2x256xf32>, vector<256x128xf32>, vector<2x128xf32> -> vector<2x128xf32>
    %c0_49 = arith.constant 0 : index
    %c0_50 = arith.constant 0 : index
    %88 = vector.load %arg15[%c0_49, %c0_50] : memref<1x128xf32, #tpu.memory_space<vmem>>, vector<1x128xf32>
    %89 = vector.broadcast %88 : vector<1x128xf32> to vector<2x128xf32>
    %90 = arith.addf %87, %89 : vector<2x128xf32>
    %c0_51 = arith.constant 0 : index
    %c0_52 = arith.constant 0 : index
    %91 = vector.load %arg16[%c0_51, %c0_52] : memref<2x128xf32, #tpu.memory_space<vmem>>, vector<2x128xf32>
    tpu.vector_store %arg16[%c0_51, %c0_52], %90 {strides = array<i32>} : memref<2x128xf32, #tpu.memory_space<vmem>>, vector<2x128xf32>,
    return
  }
  func.func @transform_0(%arg0: i32, %arg1: memref<2x2xi32, #tpu.memory_space<smem>>, %arg2: memref<2xi32, #tpu.memory_space<smem>>) -> (i32, i32) {
    %c0_i32 = arith.constant 0 : i32
    %c0_i32_0 = arith.constant 0 : i32
    %c0_i32_1 = arith.constant 0 : i32
    return %c0_i32, %c0_i32_0 : i32, i32
  }
  func.func @transform_1(%arg0: i32, %arg1: memref<2x2xi32, #tpu.memory_space<smem>>, %arg2: memref<2xi32, #tpu.memory_space<smem>>) -> (i32, i32) {
    %c0_i32 = arith.constant 0 : i32
    %c0_i32_0 = arith.constant 0 : i32
    %c0_i32_1 = arith.constant 0 : i32
    return %c0_i32, %c0_i32_0 : i32, i32
  }
  func.func @transform_2(%arg0: i32, %arg1: memref<2x2xi32, #tpu.memory_space<smem>>, %arg2: memref<2xi32, #tpu.memory_space<smem>>) -> (i32, i32) {
    %c0_i32 = arith.constant 0 : i32
    %c0_i32_0 = arith.constant 0 : i32
    %c0_i32_1 = arith.constant 0 : i32
    return %c0_i32, %c0_i32_0 : i32, i32
  }
  func.func @transform_3(%arg0: i32, %arg1: memref<2x2xi32, #tpu.memory_space<smem>>, %arg2: memref<2xi32, #tpu.memory_space<smem>>) -> (i32, i32) {
    %c0_i32 = arith.constant 0 : i32
    %c0_i32_0 = arith.constant 0 : i32
    %c0_i32_1 = arith.constant 0 : i32
    return %c0_i32, %c0_i32_0 : i32, i32
  }
  func.func @transform_4(%arg0: i32, %arg1: memref<2x2xi32, #tpu.memory_space<smem>>, %arg2: memref<2xi32, #tpu.memory_space<smem>>) -> (i32, i32) {
    %c0_i32 = arith.constant 0 : i32
    %c0_i32_0 = arith.constant 0 : i32
    %c0_i32_1 = arith.constant 0 : i32
    return %c0_i32, %c0_i32_0 : i32, i32
  }
  func.func @transform_5(%arg0: i32, %arg1: memref<2x2xi32, #tpu.memory_space<smem>>, %arg2: memref<2xi32, #tpu.memory_space<smem>>) -> (i32, i32) {
    %c0_i32 = arith.constant 0 : i32
    %c0_i32_0 = arith.constant 0 : i32
    %c0_i32_1 = arith.constant 0 : i32
    return %c0_i32, %c0_i32_0 : i32, i32
  }
  func.func @transform_6(%arg0: i32, %arg1: memref<2x2xi32, #tpu.memory_space<smem>>, %arg2: memref<2xi32, #tpu.memory_space<smem>>) -> (i32, i32) {
    %c0_i32 = arith.constant 0 : i32
    %c0_i32_0 = arith.constant 0 : i32
    %c0_i32_1 = arith.constant 0 : i32
    return %c0_i32, %c0_i32_0 : i32, i32
  }
  func.func @transform_7(%arg0: i32, %arg1: memref<2x2xi32, #tpu.memory_space<smem>>, %arg2: memref<2xi32, #tpu.memory_space<smem>>) -> (i32, i32) {
    %c0_i32 = arith.constant 0 : i32
    %c0_i32_0 = arith.constant 0 : i32
    %c0_i32_1 = arith.constant 0 : i32
    return %c0_i32, %c0_i32_0 : i32, i32
  }
  func.func @transform_8(%arg0: i32, %arg1: memref<2x2xi32, #tpu.memory_space<smem>>, %arg2: memref<2xi32, #tpu.memory_space<smem>>) -> (i32, i32) {
    %c0_i32 = arith.constant 0 : i32
    %c0_i32_0 = arith.constant 0 : i32
    %c0_i32_1 = arith.constant 0 : i32
    return %c0_i32, %c0_i32_0 : i32, i32
  }
  func.func @transform_9(%arg0: i32, %arg1: memref<2x2xi32, #tpu.memory_space<smem>>, %arg2: memref<2xi32, #tpu.memory_space<smem>>) -> (i32, i32) {
    %c0_i32 = arith.constant 0 : i32
    %c0_i32_0 = arith.constant 0 : i32
    %c0_i32_1 = arith.constant 0 : i32
    return %c0_i32, %c0_i32_0 : i32, i32
  }
  func.func @transform_10(%arg0: i32, %arg1: memref<2x2xi32, #tpu.memory_space<smem>>, %arg2: memref<2xi32, #tpu.memory_space<smem>>) -> (i32, i32) {
    %c0_i32 = arith.constant 0 : i32
    %c0_i32_0 = arith.constant 0 : i32
    %c0_i32_1 = arith.constant 0 : i32
    return %c0_i32, %c0_i32_0 : i32, i32
  }
  func.func @transform_11(%arg0: i32, %arg1: memref<2x2xi32, #tpu.memory_space<smem>>, %arg2: memref<2xi32, #tpu.memory_space<smem>>) -> (i32, i32) {
    %c0_i32 = arith.constant 0 : i32
    %c0_i32_0 = arith.constant 0 : i32
    %c0_i32_1 = arith.constant 0 : i32
    return %c0_i32, %c0_i32_0 : i32, i32
  }
  func.func @transform_12(%arg0: i32, %arg1: memref<2x2xi32, #tpu.memory_space<smem>>, %arg2: memref<2xi32, #tpu.memory_space<smem>>) -> (i32, i32) {
    %c0_i32 = arith.constant 0 : i32
    %c0_i32_0 = arith.constant 0 : i32
    %c0_i32_1 = arith.constant 0 : i32
    return %c0_i32, %c0_i32_0 : i32, i32
  }
  func.func @transform_13(%arg0: i32, %arg1: memref<2x2xi32, #tpu.memory_space<smem>>, %arg2: memref<2xi32, #tpu.memory_space<smem>>) -> (i32, i32) {
    %c0_i32 = arith.constant 0 : i32
    %c0_i32_0 = arith.constant 0 : i32
    %c0_i32_1 = arith.constant 0 : i32
    return %c0_i32, %c0_i32_0 : i32, i32
  }
}

</mosaic_0001>

<llo_original>
// kernel: tpu_custom_call.1
$region0: #{tpu_custom_call.1}
  #allocation0 [shape = 'u32[]', space=smem, size = 0x4, offset = 0x4, fixed_abs, tag = 'smem constant byte address 0x4 - core index']
  #allocation1 [shape = 'u32[144,128]{1,0:T(1,128)}', space=vmem, size = 0x12000, scoped, tag = 'internal scratch']
  #allocation2 [shape = 's32[1]{0}', space=sflag, size = 0x4, scoped, tag = 'scoped memory for tpu_custom_call.1']
  #allocation3 [shape = 'u8[1024]{0}', space=smem, size = 0x400, scoped, tag = 'prefetched SMEM operand 0']
  #allocation4 [shape = 'u8[512]{0}', space=smem, size = 0x200, scoped, tag = 'prefetched SMEM operand 1']
  %s0 = inlined_call_operand.vmem [shape: s32[2,2], index: 0, kind: input, shape index: {}]
  %s1 = inlined_call_operand.vmem [shape: s32[2], index: 1, kind: input, shape index: {}]
  %s2 = inlined_call_operand.vmem [shape: f32[2,32], index: 2, kind: input, shape index: {}]
  %s3 = inlined_call_operand.vmem [shape: f32[32,16], index: 3, kind: input, shape index: {}]
  %s4 = inlined_call_operand.vmem [shape: f32[10,8], index: 4, kind: input, shape index: {}]
  %s5 = inlined_call_operand.vmem [shape: f32[32,64], index: 5, kind: input, shape index: {}]
  %s6 = inlined_call_operand.vmem [shape: f32[1,64], index: 6, kind: input, shape index: {}]
  %s7 = inlined_call_operand.vmem [shape: f32[64,16], index: 7, kind: input, shape index: {}]
  %s8 = inlined_call_operand.vmem [shape: f32[1,16], index: 8, kind: input, shape index: {}]
  %s9 = inlined_call_operand.vmem [shape: f32[16,256], index: 9, kind: input, shape index: {}]
  %s10 = inlined_call_operand.vmem [shape: f32[8,256], index: 10, kind: input, shape index: {}]
  %s11 = inlined_call_operand.vmem [shape: f32[16,256], index: 11, kind: input, shape index: {}]
  %s12 = inlined_call_operand.vmem [shape: f32[1,256], index: 12, kind: input, shape index: {}]
  %s13 = inlined_call_operand.hbm [shape: f32[256,128], index: 13, kind: input, shape index: {}]
  %s14 = inlined_call_operand.vmem [shape: f32[1,128], index: 14, kind: input, shape index: {}]
  %s15 = inlined_call_operand.hbm [shape: f32[2,128], index: 15, kind: output, shape index: {}]
  %s16 = sld [smem:[#allocation0]]
  $region66: #{tpu_custom_call.1} parent=0
    _
  %s18 = ssub.s32 1, %s16
  %s19 = scalar_select 0, %s18, %s16
  %s20 = sshll.u32 %s0, 4
  %s21 = int_to_ptr.vmem [resolvable:$true] %s20
  %23 = dma.vmem_to_smem %s21, 32, [#allocation3], [#allocation2]
  %s24 = sshll.u32 %s1, 4
  %s25 = int_to_ptr.vmem [resolvable:$true] %s24
  %27 = dma.vmem_to_smem %s25, 16, [#allocation4], [#allocation2]
  %28 = dma.done [#allocation2], 48
  %29 = sfence
  $region1: #{tpu_custom_call.1} parent=0
    #allocation5 [shape = 'u8[131072]{0}', space=vmem, size = 0x20000, scoped, tag = 'input window, operand 13, single buffered']
    #allocation6 [shape = 's32[1]{0}', space=sflag, size = 0x4, scoped, tag = 'scoped memory for tpu_custom_call.1']
    #allocation7 [shape = 's32[1]{0}', space=sflag, size = 0x4, scoped, tag = 'scoped memory for tpu_custom_call.1']
    #allocation8 [shape = 'u8[1024]{0}', space=vmem, size = 0x400, scoped, tag = 'output window, operand 0, single buffered']
    %30 = vsyncpa [#allocation6], 0
    %31 = vsyncpa [#allocation7], 0
    // Predicated region
    $region2: #{tpu_custom_call.1} parent=1 // pred_check
      _
    $region3: #{tpu_custom_call.1} parent=1 // pred_check_branch
      %33 = sbr.rel (0) target = $region5
    $region4: #{tpu_custom_call.1} parent=1 // pred_region
      _
    $region5: #{tpu_custom_call.1} parent=1 // pred_fallthru
      _
    // Predicated region
    $region6: #{tpu_custom_call.1} parent=1 // pred_check
      _
    $region7: #{tpu_custom_call.1} parent=1 // pred_check_branch
      %35 = sbr.rel (0) target = $region9
    $region8: #{tpu_custom_call.1} parent=1 // pred_region
      _
    $region9: #{tpu_custom_call.1} parent=1 // pred_fallthru
      _
    // Predicated region
    $region10: #{tpu_custom_call.1} parent=1 // pred_check
      _
    $region11: #{tpu_custom_call.1} parent=1 // pred_check_branch
      %37 = sbr.rel (0) target = $region13
    $region12: #{tpu_custom_call.1} parent=1 // pred_region
      _
    $region13: #{tpu_custom_call.1} parent=1 // pred_fallthru
      _
    // Predicated region
    $region14: #{tpu_custom_call.1} parent=1 // pred_check
      _
    $region15: #{tpu_custom_call.1} parent=1 // pred_check_branch
      %39 = sbr.rel (0) target = $region17
    $region16: #{tpu_custom_call.1} parent=1 // pred_region
      _
    $region17: #{tpu_custom_call.1} parent=1 // pred_fallthru
      _
    // Predicated region
    $region18: #{tpu_custom_call.1} parent=1 // pred_check
      _
    $region19: #{tpu_custom_call.1} parent=1 // pred_check_branch
      %41 = sbr.rel (0) target = $region21
    $region20: #{tpu_custom_call.1} parent=1 // pred_region
      _
    $region21: #{tpu_custom_call.1} parent=1 // pred_fallthru
      _
    // Predicated region
    $region22: #{tpu_custom_call.1} parent=1 // pred_check
      _
    $region23: #{tpu_custom_call.1} parent=1 // pred_check_branch
      %43 = sbr.rel (0) target = $region25
    $region24: #{tpu_custom_call.1} parent=1 // pred_region
      _
    $region25: #{tpu_custom_call.1} parent=1 // pred_fallthru
      _
    // Predicated region
    $region26: #{tpu_custom_call.1} parent=1 // pred_check
      _
    $region27: #{tpu_custom_call.1} parent=1 // pred_check_branch
      %45 = sbr.rel (0) target = $region29
    $region28: #{tpu_custom_call.1} parent=1 // pred_region
      _
    $region29: #{tpu_custom_call.1} parent=1 // pred_fallthru
      _
    // Predicated region
    $region30: #{tpu_custom_call.1} parent=1 // pred_check
      _
    $region31: #{tpu_custom_call.1} parent=1 // pred_check_branch
      %47 = sbr.rel (0) target = $region33
    $region32: #{tpu_custom_call.1} parent=1 // pred_region
      _
    $region33: #{tpu_custom_call.1} parent=1 // pred_fallthru
      _
    // Predicated region
    $region34: #{tpu_custom_call.1} parent=1 // pred_check
      _
    $region35: #{tpu_custom_call.1} parent=1 // pred_check_branch
      %49 = sbr.rel (0) target = $region37
    $region36: #{tpu_custom_call.1} parent=1 // pred_region
      _
    $region37: #{tpu_custom_call.1} parent=1 // pred_fallthru
      _
    // Predicated region
    $region38: #{tpu_custom_call.1} parent=1 // pred_check
      _
    $region39: #{tpu_custom_call.1} parent=1 // pred_check_branch
      %51 = sbr.rel (0) target = $region41
    $region40: #{tpu_custom_call.1} parent=1 // pred_region
      _
    $region41: #{tpu_custom_call.1} parent=1 // pred_fallthru
      _
    // Predicated region
    $region42: #{tpu_custom_call.1} parent=1 // pred_check
      _
    $region43: #{tpu_custom_call.1} parent=1 // pred_check_branch
      %53 = sbr.rel (0) target = $region45
    $region44: #{tpu_custom_call.1} parent=1 // pred_region
      _
    $region45: #{tpu_custom_call.1} parent=1 // pred_fallthru
      _
    // Predicated region
    $region46: #{tpu_custom_call.1} parent=1 // pred_check
      _
    $region47: #{tpu_custom_call.1} parent=1 // pred_check_branch
      %55 = sbr.rel (0) target = $region49
    $region48: #{tpu_custom_call.1} parent=1 // pred_region
      %s57 = ssub.s32 4096, 4096
      %58 = vsyncadd [#allocation6], %s57
      %s59 = sshll.u32 [#allocation5], 4
      %s60 = int_to_ptr.vmem [resolvable:$true] %s59
      %65 = dma.hbm_to_vmem [thread:$0]  %s13, 4096, %s60, [#allocation6], 128, 128, 8
    $region49: #{tpu_custom_call.1} parent=1 // pred_fallthru
      _
    // Predicated region
    $region50: #{tpu_custom_call.1} parent=1 // pred_check
      _
    $region51: #{tpu_custom_call.1} parent=1 // pred_check_branch
      %67 = sbr.rel (0) target = $region53
    $region52: #{tpu_custom_call.1} parent=1 // pred_region
      _
    $region53: #{tpu_custom_call.1} parent=1 // pred_fallthru
      _
    // Predicated region
    $region54: #{tpu_custom_call.1} parent=1 // pred_check
      _
    $region55: #{tpu_custom_call.1} parent=1 // pred_check_branch
      %69 = sbr.rel (0) target = $region57
    $region56: #{tpu_custom_call.1} parent=1 // pred_region
      %70 = dma.done [#allocation6], 4096
    $region57: #{tpu_custom_call.1} parent=1 // pred_fallthru
      _
    %v71 = vlaneseq
    %v72 = vand.u32 %v71, 127
    %v73 = vlaneseq
    %v74 = vshrl.u32 %v73, 7
    %s75 = sld [smem:[#allocation3]]
    %v76 = vstv %s75
    %vm77 = vcmp.eq.s32.totalorder %v72, %v76
    %vm78 = vcmp.eq.s32.totalorder %v74, 0
    %vm79 = vmand %vm77, %vm78
    %s80 = sld [smem:[#allocation3 + $0x1]]
    %s81 = sadd.s32 %s80, 16
    %v82 = vstv %s81
    %vm83 = vcmp.eq.s32.totalorder %v72, %v82
    %vm84 = vmand %vm83, %vm78
    %vm85 = vmor %vm79, %vm84
    %s86 = sld [smem:[#allocation3 + $0x80]]
    %v87 = vstv %s86
    %vm88 = vcmp.eq.s32.totalorder %v72, %v87
    %vm89 = vcmp.eq.s32.totalorder %v74, 1
    %vm90 = vmand %vm88, %vm89
    %vm91 = vmor %vm85, %vm90
    %s92 = sld [smem:[#allocation3 + $0x81]]
    %s93 = sadd.s32 %s92, 16
    %v94 = vstv %s93
    %vm95 = vcmp.eq.s32.totalorder %v72, %v94
    %vm96 = vmand %vm95, %vm89
    %vm97 = vmor %vm91, %vm96
    %v98 = vsel %vm97, 1, 0
    %v99 = vcvt.s32.f32 %v98
    %s100 = sld [smem:[#allocation4]]
    %v101 = vstv %s100
    %vm102 = vcmp.eq.s32.totalorder %v72, %v101
    %vm103 = vmand %vm102, %vm78
    %s104 = sld [smem:[#allocation4 + $0x1]]
    %v105 = vstv %s104
    %vm106 = vcmp.eq.s32.totalorder %v72, %v105
    %vm107 = vmand %vm106, %vm89
    %vm108 = vmor %vm103, %vm107
    %v109 = vsel %vm108, 1, 0
    %v110 = vcvt.s32.f32 %v109
    %v111 = vld [vmem:[%s3] sm:$0xff]
    %v112 = vld [vmem:[%s3 + $0x8] sm:$0xff]
    %v113 = vld [vmem:[%s3 + $0x10] sm:$0xff]
    %v114 = vld [vmem:[%s3 + $0x18] sm:$0xff]
    %vm115 = vcmask 261120
    %v117 = vsel %vm115, %v99, 0
    %119 = vmatprep.subr.mxu0 0.0
    %120 = vmatpush1.msra.mxu0 %v111
    %121 = vmatprep.subr.mxu0 0.0
    %122 = vmatpush1.msra.mxu0 %v112
    %123 = vmatprep.subr.mxu0 0.0
    %124 = vmatpush1.msra.mxu0 %v113
    %125 = vmatprep.subr.mxu0 0.0
    %126 = vmatpush1.msra.mxu0 %v114
    %127 = vmatprep.subr.mxu0 0.0
    %128 = vmatpush1.msra.mxu0 0.0
    %129 = vmatprep.subr.mxu0 0.0
    %130 = vmatpush1.msra.mxu0 0.0
    %131 = vmatprep.subr.mxu0 0.0
    %132 = vmatpush1.msra.mxu0 0.0
    %133 = vmatprep.subr.mxu0 0.0
    %134 = vmatpush1.msra.mxu0 0.0
    %135 = vmatprep.subr.mxu0 0.0
    %136 = vmatpush1.msra.mxu0 0.0
    %137 = vmatprep.subr.mxu0 0.0
    %138 = vmatpush1.msra.mxu0 0.0
    %139 = vmatprep.subr.mxu0 0.0
    %140 = vmatpush1.msra.mxu0 0.0
    %141 = vmatprep.subr.mxu0 0.0
    %142 = vmatpush1.msra.mxu0 0.0
    %143 = vmatprep.subr.mxu0 0.0
    %144 = vmatpush1.msra.mxu0 0.0
    %145 = vmatprep.subr.mxu0 0.0
    %146 = vmatpush1.msra.mxu0 0.0
    %147 = vmatprep.subr.mxu0 0.0
    %148 = vmatpush1.msra.mxu0 0.0
    %149 = vmatprep.subr.mxu0 0.0
    %150 = vmatpush1.msra.mxu0 0.0
    %151 = vmatprep.subr.mxu0 0.0
    %152 = vmatpush1.msra.mxu0 0.0
    %153 = vmatprep.subr.mxu0 0.0
    %154 = vmatpush1.msra.mxu0 0.0
    %155 = vmatprep.subr.mxu0 0.0
    %156 = vmatpush1.msra.mxu0 0.0
    %157 = vmatprep.subr.mxu0 0.0
    %158 = vmatpush1.msra.mxu0 0.0
    %159 = vmatprep.subr.mxu0 0.0
    %160 = vmatpush1.msra.mxu0 0.0
    %161 = vmatprep.subr.mxu0 0.0
    %162 = vmatpush1.msra.mxu0 0.0
    %163 = vmatprep.subr.mxu0 0.0
    %164 = vmatpush1.msra.mxu0 0.0
    %165 = vmatprep.subr.mxu0 0.0
    %166 = vmatpush1.msra.mxu0 0.0
    %167 = vmatprep.subr.mxu0 0.0
    %168 = vmatpush1.msra.mxu0 0.0
    %169 = vmatprep.subr.mxu0 0.0
    %170 = vmatpush1.msra.mxu0 0.0
    %171 = vmatprep.subr.mxu0 0.0
    %172 = vmatpush1.msra.mxu0 0.0
    %173 = vmatprep.subr.mxu0 0.0
    %174 = vmatpush1.msra.mxu0 0.0
    %175 = vmatprep.subr.mxu0 0.0
    %176 = vmatpush1.msra.mxu0 0.0
    %177 = vmatprep.subr.mxu0 0.0
    %178 = vmatpush1.msra.mxu0 0.0
    %179 = vmatprep.subr.mxu0 0.0
    %180 = vmatpush1.msra.mxu0 0.0
    %181 = vmatprep.subr.mxu0 0.0
    %182 = vmatpush1.msra.mxu0 0.0
    %183 = vmatprep.mubr.f32.mxu0 0.0
    %184 = vmatmul.mubr.f32.gmra.mrb[0].mxu0 %v117
    %v185 = vpop.f32.mrb[0].mxu0
    %v186 = vadd.f32 0.0, %v185
    %v187 = vpop.f32.mrb[0].mxu0
    %188 = vdwg.mxu0
    %v189 = vld [vmem:[%s4] sm:$0xff]
    %v190 = vld [vmem:[%s4 + $0x8] sm:$0x3]
    %vm191 = vcmask 80896
    %v193 = vsel %vm191, %v110, 0
    %vm195 = vcmask 1041408
    %v197 = vsel %vm195, %v190, 0
    %199 = vmatprep.subr.mxu0 0.0
    %200 = vmatpush1.msra.mxu0 %v189
    %201 = vmatprep.subr.mxu0 0.0
    %202 = vmatpush1.msra.mxu0 %v197
    %203 = vmatprep.subr.mxu0 0.0
    %204 = vmatpush1.msra.mxu0 0.0
    %205 = vmatprep.subr.mxu0 0.0
    %206 = vmatpush1.msra.mxu0 0.0
    %207 = vmatprep.subr.mxu0 0.0
    %208 = vmatpush1.msra.mxu0 0.0
    %209 = vmatprep.subr.mxu0 0.0
    %210 = vmatpush1.msra.mxu0 0.0
    %211 = vmatprep.subr.mxu0 0.0
    %212 = vmatpush1.msra.mxu0 0.0
    %213 = vmatprep.subr.mxu0 0.0
    %214 = vmatpush1.msra.mxu0 0.0
    %215 = vmatprep.subr.mxu0 0.0
    %216 = vmatpush1.msra.mxu0 0.0
    %217 = vmatprep.subr.mxu0 0.0
    %218 = vmatpush1.msra.mxu0 0.0
    %219 = vmatprep.subr.mxu0 0.0
    %220 = vmatpush1.msra.mxu0 0.0
    %221 = vmatprep.subr.mxu0 0.0
    %222 = vmatpush1.msra.mxu0 0.0
    %223 = vmatprep.subr.mxu0 0.0
    %224 = vmatpush1.msra.mxu0 0.0
    %225 = vmatprep.subr.mxu0 0.0
    %226 = vmatpush1.msra.mxu0 0.0
    %227 = vmatprep.subr.mxu0 0.0
    %228 = vmatpush1.msra.mxu0 0.0
    %229 = vmatprep.subr.mxu0 0.0
    %230 = vmatpush1.msra.mxu0 0.0
    %231 = vmatprep.subr.mxu0 0.0
    %232 = vmatpush1.msra.mxu0 0.0
    %233 = vmatprep.subr.mxu0 0.0
    %234 = vmatpush1.msra.mxu0 0.0
    %235 = vmatprep.subr.mxu0 0.0
    %236 = vmatpush1.msra.mxu0 0.0
    %237 = vmatprep.subr.mxu0 0.0
    %238 = vmatpush1.msra.mxu0 0.0
    %239 = vmatprep.subr.mxu0 0.0
    %240 = vmatpush1.msra.mxu0 0.0
    %241 = vmatprep.subr.mxu0 0.0
    %242 = vmatpush1.msra.mxu0 0.0
    %243 = vmatprep.subr.mxu0 0.0
    %244 = vmatpush1.msra.mxu0 0.0
    %245 = vmatprep.subr.mxu0 0.0
    %246 = vmatpush1.msra.mxu0 0.0
    %247 = vmatprep.subr.mxu0 0.0
    %248 = vmatpush1.msra.mxu0 0.0
    %249 = vmatprep.subr.mxu0 0.0
    %250 = vmatpush1.msra.mxu0 0.0
    %251 = vmatprep.subr.mxu0 0.0
    %252 = vmatpush1.msra.mxu0 0.0
    %253 = vmatprep.subr.mxu0 0.0
    %254 = vmatpush1.msra.mxu0 0.0
    %255 = vmatprep.subr.mxu0 0.0
    %256 = vmatpush1.msra.mxu0 0.0
    %257 = vmatprep.subr.mxu0 0.0
    %258 = vmatpush1.msra.mxu0 0.0
    %259 = vmatprep.subr.mxu0 0.0
    %260 = vmatpush1.msra.mxu0 0.0
    %261 = vmatprep.subr.mxu0 0.0
    %262 = vmatpush1.msra.mxu0 0.0
    %263 = vmatprep.mubr.f32.mxu0 0.0
    %264 = vmatmul.mubr.f32.gmra.mrb[0].mxu0 %v193
    %v265 = vpop.f32.mrb[0].mxu0
    %v266 = vadd.f32 0.0, %v265
    %v267 = vpop.f32.mrb[0].mxu0
    %268 = vdwg.mxu0
    %v269 = vld [vmem:[%s2] sm:$0x3]
    %v270 = vld [vmem:[%s5] sm:$0xff]
    %v271 = vld [vmem:[%s5 + $0x8] sm:$0xff]
    %v272 = vld [vmem:[%s5 + $0x10] sm:$0xff]
    %v273 = vld [vmem:[%s5 + $0x18] sm:$0xff]
    %v274 = vld [vmem:[%s6] sm:$0x1]
    %v276 = vlaneseq
    %v277 = vshrl.u32 %v276, 7
    %v278 = vsub.s32 0, %v277
    %v279 = vrot.slane %v274, %v278
    %v282 = vsel %vm115, %v269, 0
    %284 = vmatprep.subr.mxu0 0.0
    %285 = vmatpush1.msra.mxu0 %v270
    %286 = vmatprep.subr.mxu0 0.0
    %287 = vmatpush1.msra.mxu0 %v271
    %288 = vmatprep.subr.mxu0 0.0
    %289 = vmatpush1.msra.mxu0 %v272
    %290 = vmatprep.subr.mxu0 0.0
    %291 = vmatpush1.msra.mxu0 %v273
    %292 = vmatprep.subr.mxu0 0.0
    %293 = vmatpush1.msra.mxu0 0.0
    %294 = vmatprep.subr.mxu0 0.0
    %295 = vmatpush1.msra.mxu0 0.0
    %296 = vmatprep.subr.mxu0 0.0
    %297 = vmatpush1.msra.mxu0 0.0
    %298 = vmatprep.subr.mxu0 0.0
    %299 = vmatpush1.msra.mxu0 0.0
    %300 = vmatprep.subr.mxu0 0.0
    %301 = vmatpush1.msra.mxu0 0.0
    %302 = vmatprep.subr.mxu0 0.0
    %303 = vmatpush1.msra.mxu0 0.0
    %304 = vmatprep.subr.mxu0 0.0
    %305 = vmatpush1.msra.mxu0 0.0
    %306 = vmatprep.subr.mxu0 0.0
    %307 = vmatpush1.msra.mxu0 0.0
    %308 = vmatprep.subr.mxu0 0.0
    %309 = vmatpush1.msra.mxu0 0.0
    %310 = vmatprep.subr.mxu0 0.0
    %311 = vmatpush1.msra.mxu0 0.0
    %312 = vmatprep.subr.mxu0 0.0
    %313 = vmatpush1.msra.mxu0 0.0
    %314 = vmatprep.subr.mxu0 0.0
    %315 = vmatpush1.msra.mxu0 0.0
    %316 = vmatprep.subr.mxu0 0.0
    %317 = vmatpush1.msra.mxu0 0.0
    %318 = vmatprep.subr.mxu0 0.0
    %319 = vmatpush1.msra.mxu0 0.0
    %320 = vmatprep.subr.mxu0 0.0
    %321 = vmatpush1.msra.mxu0 0.0
    %322 = vmatprep.subr.mxu0 0.0
    %323 = vmatpush1.msra.mxu0 0.0
    %324 = vmatprep.subr.mxu0 0.0
    %325 = vmatpush1.msra.mxu0 0.0
    %326 = vmatprep.subr.mxu0 0.0
    %327 = vmatpush1.msra.mxu0 0.0
    %328 = vmatprep.subr.mxu0 0.0
    %329 = vmatpush1.msra.mxu0 0.0
    %330 = vmatprep.subr.mxu0 0.0
    %331 = vmatpush1.msra.mxu0 0.0
    %332 = vmatprep.subr.mxu0 0.0
    %333 = vmatpush1.msra.mxu0 0.0
    %334 = vmatprep.subr.mxu0 0.0
    %335 = vmatpush1.msra.mxu0 0.0
    %336 = vmatprep.subr.mxu0 0.0
    %337 = vmatpush1.msra.mxu0 0.0
    %338 = vmatprep.subr.mxu0 0.0
    %339 = vmatpush1.msra.mxu0 0.0
    %340 = vmatprep.subr.mxu0 0.0
    %341 = vmatpush1.msra.mxu0 0.0
    %342 = vmatprep.subr.mxu0 0.0
    %343 = vmatpush1.msra.mxu0 0.0
    %344 = vmatprep.subr.mxu0 0.0
    %345 = vmatpush1.msra.mxu0 0.0
    %346 = vmatprep.subr.mxu0 0.0
    %347 = vmatpush1.msra.mxu0 0.0
    %348 = vmatprep.mubr.f32.mxu0 0.0
    %349 = vmatmul.mubr.f32.gmra.mrb[0].mxu0 %v282
    %v350 = vpop.f32.mrb[0].mxu0
    %v351 = vadd.f32 %v279, %v350
    %v352 = vpop.f32.mrb[0].mxu0
    %353 = vdwg.mxu0
    %v354 = vmax.f32 %v351, 0.0
    %v355 = vld [vmem:[%s7] sm:$0xff]
    %v356 = vld [vmem:[%s7 + $0x8] sm:$0xff]
    %v357 = vld [vmem:[%s7 + $0x10] sm:$0xff]
    %v358 = vld [vmem:[%s7 + $0x18] sm:$0xff]
    %v359 = vld [vmem:[%s7 + $0x20] sm:$0xff]
    %v360 = vld [vmem:[%s7 + $0x28] sm:$0xff]
    %v361 = vld [vmem:[%s7 + $0x30] sm:$0xff]
    %v362 = vld [vmem:[%s7 + $0x38] sm:$0xff]
    %v363 = vld [vmem:[%s8] sm:$0x1]
    %v365 = vlaneseq
    %v366 = vshrl.u32 %v365, 7
    %v367 = vsub.s32 0, %v366
    %v368 = vrot.slane %v363, %v367
    %vm370 = vcmask 523264
    %v372 = vsel %vm370, %v354, 0
    %374 = vmatprep.subr.mxu0 0.0
    %375 = vmatpush1.msra.mxu0 %v355
    %376 = vmatprep.subr.mxu0 0.0
    %377 = vmatpush1.msra.mxu0 %v356
    %378 = vmatprep.subr.mxu0 0.0
    %379 = vmatpush1.msra.mxu0 %v357
    %380 = vmatprep.subr.mxu0 0.0
    %381 = vmatpush1.msra.mxu0 %v358
    %382 = vmatprep.subr.mxu0 0.0
    %383 = vmatpush1.msra.mxu0 %v359
    %384 = vmatprep.subr.mxu0 0.0
    %385 = vmatpush1.msra.mxu0 %v360
    %386 = vmatprep.subr.mxu0 0.0
    %387 = vmatpush1.msra.mxu0 %v361
    %388 = vmatprep.subr.mxu0 0.0
    %389 = vmatpush1.msra.mxu0 %v362
    %390 = vmatprep.subr.mxu0 0.0
    %391 = vmatpush1.msra.mxu0 0.0
    %392 = vmatprep.subr.mxu0 0.0
    %393 = vmatpush1.msra.mxu0 0.0
    %394 = vmatprep.subr.mxu0 0.0
    %395 = vmatpush1.msra.mxu0 0.0
    %396 = vmatprep.subr.mxu0 0.0
    %397 = vmatpush1.msra.mxu0 0.0
    %398 = vmatprep.subr.mxu0 0.0
    %399 = vmatpush1.msra.mxu0 0.0
    %400 = vmatprep.subr.mxu0 0.0
    %401 = vmatpush1.msra.mxu0 0.0
    %402 = vmatprep.subr.mxu0 0.0
    %403 = vmatpush1.msra.mxu0 0.0
    %404 = vmatprep.subr.mxu0 0.0
    %405 = vmatpush1.msra.mxu0 0.0
    %406 = vmatprep.subr.mxu0 0.0
    %407 = vmatpush1.msra.mxu0 0.0
    %408 = vmatprep.subr.mxu0 0.0
    %409 = vmatpush1.msra.mxu0 0.0
    %410 = vmatprep.subr.mxu0 0.0
    %411 = vmatpush1.msra.mxu0 0.0
    %412 = vmatprep.subr.mxu0 0.0
    %413 = vmatpush1.msra.mxu0 0.0
    %414 = vmatprep.subr.mxu0 0.0
    %415 = vmatpush1.msra.mxu0 0.0
    %416 = vmatprep.subr.mxu0 0.0
    %417 = vmatpush1.msra.mxu0 0.0
    %418 = vmatprep.subr.mxu0 0.0
    %419 = vmatpush1.msra.mxu0 0.0
    %420 = vmatprep.subr.mxu0 0.0
    %421 = vmatpush1.msra.mxu0 0.0
    %422 = vmatprep.subr.mxu0 0.0
    %423 = vmatpush1.msra.mxu0 0.0
    %424 = vmatprep.subr.mxu0 0.0
    %425 = vmatpush1.msra.mxu0 0.0
    %426 = vmatprep.subr.mxu0 0.0
    %427 = vmatpush1.msra.mxu0 0.0
    %428 = vmatprep.subr.mxu0 0.0
    %429 = vmatpush1.msra.mxu0 0.0
    %430 = vmatprep.subr.mxu0 0.0
    %431 = vmatpush1.msra.mxu0 0.0
    %432 = vmatprep.subr.mxu0 0.0
    %433 = vmatpush1.msra.mxu0 0.0
    %434 = vmatprep.subr.mxu0 0.0
    %435 = vmatpush1.msra.mxu0 0.0
    %436 = vmatprep.subr.mxu0 0.0
    %437 = vmatpush1.msra.mxu0 0.0
    %438 = vmatprep.mubr.f32.mxu0 0.0
    %439 = vmatmul.mubr.f32.gmra.mrb[0].mxu0 %v372
    %v440 = vpop.f32.mrb[0].mxu0
    %v441 = vadd.f32 %v368, %v440
    %v442 = vpop.f32.mrb[0].mxu0
    %443 = vdwg.mxu0
    %v444 = vld [vmem:[%s9] sm:$0xff]
    %v445 = vld [vmem:[%s9 + $0x8] sm:$0xff]
    %v446 = vld [vmem:[%s9 + $0x10] sm:$0xff]
    %v447 = vld [vmem:[%s9 + $0x18] sm:$0xff]
    %v448 = vld [vmem:[%s10] sm:$0xff]
    %v449 = vld [vmem:[%s10 + $0x8] sm:$0xff]
    %vm450 = vcmask 64512
    %v452 = vsel %vm450, %v266, 0
    %454 = vmatprep.subr.mxu0 %v449
    %455 = vmatpush1.msra.mxu0 %v448
    %456 = vmatprep.subr.mxu0 0.0
    %457 = vmatpush1.msra.mxu0 0.0
    %458 = vmatprep.subr.mxu0 0.0
    %459 = vmatpush1.msra.mxu0 0.0
    %460 = vmatprep.subr.mxu0 0.0
    %461 = vmatpush1.msra.mxu0 0.0
    %462 = vmatprep.subr.mxu0 0.0
    %463 = vmatpush1.msra.mxu0 0.0
    %464 = vmatprep.subr.mxu0 0.0
    %465 = vmatpush1.msra.mxu0 0.0
    %466 = vmatprep.subr.mxu0 0.0
    %467 = vmatpush1.msra.mxu0 0.0
    %468 = vmatprep.subr.mxu0 0.0
    %469 = vmatpush1.msra.mxu0 0.0
    %470 = vmatprep.subr.mxu0 0.0
    %471 = vmatpush1.msra.mxu0 0.0
    %472 = vmatprep.subr.mxu0 0.0
    %473 = vmatpush1.msra.mxu0 0.0
    %474 = vmatprep.subr.mxu0 0.0
    %475 = vmatpush1.msra.mxu0 0.0
    %476 = vmatprep.subr.mxu0 0.0
    %477 = vmatpush1.msra.mxu0 0.0
    %478 = vmatprep.subr.mxu0 0.0
    %479 = vmatpush1.msra.mxu0 0.0
    %480 = vmatprep.subr.mxu0 0.0
    %481 = vmatpush1.msra.mxu0 0.0
    %482 = vmatprep.subr.mxu0 0.0
    %483 = vmatpush1.msra.mxu0 0.0
    %484 = vmatprep.subr.mxu0 0.0
    %485 = vmatpush1.msra.mxu0 0.0
    %486 = vmatprep.subr.mxu0 0.0
    %487 = vmatpush1.msra.mxu0 0.0
    %488 = vmatprep.subr.mxu0 0.0
    %489 = vmatpush1.msra.mxu0 0.0
    %490 = vmatprep.subr.mxu0 0.0
    %491 = vmatpush1.msra.mxu0 0.0
    %492 = vmatprep.subr.mxu0 0.0
    %493 = vmatpush1.msra.mxu0 0.0
    %494 = vmatprep.subr.mxu0 0.0
    %495 = vmatpush1.msra.mxu0 0.0
    %496 = vmatprep.subr.mxu0 0.0
    %497 = vmatpush1.msra.mxu0 0.0
    %498 = vmatprep.subr.mxu0 0.0
    %499 = vmatpush1.msra.mxu0 0.0
    %500 = vmatprep.subr.mxu0 0.0
    %501 = vmatpush1.msra.mxu0 0.0
    %502 = vmatprep.subr.mxu0 0.0
    %503 = vmatpush1.msra.mxu0 0.0
    %504 = vmatprep.subr.mxu0 0.0
    %505 = vmatpush1.msra.mxu0 0.0
    %506 = vmatprep.subr.mxu0 0.0
    %507 = vmatpush1.msra.mxu0 0.0
    %508 = vmatprep.subr.mxu0 0.0
    %509 = vmatpush1.msra.mxu0 0.0
    %510 = vmatprep.subr.mxu0 0.0
    %511 = vmatpush1.msra.mxu0 0.0
    %512 = vmatprep.subr.mxu0 0.0
    %513 = vmatpush1.msra.mxu0 0.0
    %514 = vmatprep.subr.mxu0 0.0
    %515 = vmatpush1.msra.mxu0 0.0
    %516 = vmatprep.subr.mxu0 0.0
    %517 = vmatpush1.msra.mxu0 0.0
    %518 = vmatprep.mubr.f32.mxu0 0.0
    %519 = vmatmul.mubr.f32.gmra.mrb[0].mxu0 %v452
    %v520 = vpop.f32.mrb[0].mxu0
    %v521 = vadd.f32 0.0, %v520
    %v522 = vpop.f32.mrb[0].mxu0
    %v523 = vadd.f32 0.0, %v522
    %524 = vdwg.mxu0
    %vm525 = vcmask 130048
    %v527 = vsel %vm525, %v186, 0
    %529 = vmatprep.subr.mxu0 %v445
    %530 = vmatpush1.msra.mxu0 %v444
    %531 = vmatprep.subr.mxu0 %v447
    %532 = vmatpush1.msra.mxu0 %v446
    %533 = vmatprep.subr.mxu0 0.0
    %534 = vmatpush1.msra.mxu0 0.0
    %535 = vmatprep.subr.mxu0 0.0
    %536 = vmatpush1.msra.mxu0 0.0
    %537 = vmatprep.subr.mxu0 0.0
    %538 = vmatpush1.msra.mxu0 0.0
    %539 = vmatprep.subr.mxu0 0.0
    %540 = vmatpush1.msra.mxu0 0.0
    %541 = vmatprep.subr.mxu0 0.0
    %542 = vmatpush1.msra.mxu0 0.0
    %543 = vmatprep.subr.mxu0 0.0
    %544 = vmatpush1.msra.mxu0 0.0
    %545 = vmatprep.subr.mxu0 0.0
    %546 = vmatpush1.msra.mxu0 0.0
    %547 = vmatprep.subr.mxu0 0.0
    %548 = vmatpush1.msra.mxu0 0.0
    %549 = vmatprep.subr.mxu0 0.0
    %550 = vmatpush1.msra.mxu0 0.0
    %551 = vmatprep.subr.mxu0 0.0
    %552 = vmatpush1.msra.mxu0 0.0
    %553 = vmatprep.subr.mxu0 0.0
    %554 = vmatpush1.msra.mxu0 0.0
    %555 = vmatprep.subr.mxu0 0.0
    %556 = vmatpush1.msra.mxu0 0.0
    %557 = vmatprep.subr.mxu0 0.0
    %558 = vmatpush1.msra.mxu0 0.0
    %559 = vmatprep.subr.mxu0 0.0
    %560 = vmatpush1.msra.mxu0 0.0
    %561 = vmatprep.subr.mxu0 0.0
    %562 = vmatpush1.msra.mxu0 0.0
    %563 = vmatprep.subr.mxu0 0.0
    %564 = vmatpush1.msra.mxu0 0.0
    %565 = vmatprep.subr.mxu0 0.0
    %566 = vmatpush1.msra.mxu0 0.0
    %567 = vmatprep.subr.mxu0 0.0
    %568 = vmatpush1.msra.mxu0 0.0
    %569 = vmatprep.subr.mxu0 0.0
    %570 = vmatpush1.msra.mxu0 0.0
    %571 = vmatprep.subr.mxu0 0.0
    %572 = vmatpush1.msra.mxu0 0.0
    %573 = vmatprep.subr.mxu0 0.0
    %574 = vmatpush1.msra.mxu0 0.0
    %575 = vmatprep.subr.mxu0 0.0
    %576 = vmatpush1.msra.mxu0 0.0
    %577 = vmatprep.subr.mxu0 0.0
    %578 = vmatpush1.msra.mxu0 0.0
    %579 = vmatprep.subr.mxu0 0.0
    %580 = vmatpush1.msra.mxu0 0.0
    %581 = vmatprep.subr.mxu0 0.0
    %582 = vmatpush1.msra.mxu0 0.0
    %583 = vmatprep.subr.mxu0 0.0
    %584 = vmatpush1.msra.mxu0 0.0
    %585 = vmatprep.subr.mxu0 0.0
    %586 = vmatpush1.msra.mxu0 0.0
    %587 = vmatprep.subr.mxu0 0.0
    %588 = vmatpush1.msra.mxu0 0.0
    %589 = vmatprep.subr.mxu0 0.0
    %590 = vmatpush1.msra.mxu0 0.0
    %591 = vmatprep.subr.mxu0 0.0
    %592 = vmatpush1.msra.mxu0 0.0
    %593 = vmatprep.mubr.f32.mxu0 0.0
    %594 = vmatmul.mubr.f32.gmra.mrb[0].mxu0 %v527
    %v595 = vpop.f32.mrb[0].mxu0
    %v596 = vadd.f32 %v521, %v595
    %v597 = vpop.f32.mrb[0].mxu0
    %v598 = vadd.f32 %v523, %v597
    %599 = vdwg.mxu0
    %v600 = vld [vmem:[%s11] sm:$0xff]
    %v601 = vld [vmem:[%s11 + $0x8] sm:$0xff]
    %v602 = vld [vmem:[%s11 + $0x10] sm:$0xff]
    %v603 = vld [vmem:[%s11 + $0x18] sm:$0xff]
    %v605 = vsel %vm525, %v441, 0
    %607 = vmatprep.subr.mxu0 %v601
    %608 = vmatpush1.msra.mxu0 %v600
    %609 = vmatprep.subr.mxu0 %v603
    %610 = vmatpush1.msra.mxu0 %v602
    %611 = vmatprep.subr.mxu0 0.0
    %612 = vmatpush1.msra.mxu0 0.0
    %613 = vmatprep.subr.mxu0 0.0
    %614 = vmatpush1.msra.mxu0 0.0
    %615 = vmatprep.subr.mxu0 0.0
    %616 = vmatpush1.msra.mxu0 0.0
    %617 = vmatprep.subr.mxu0 0.0
    %618 = vmatpush1.msra.mxu0 0.0
    %619 = vmatprep.subr.mxu0 0.0
    %620 = vmatpush1.msra.mxu0 0.0
    %621 = vmatprep.subr.mxu0 0.0
    %622 = vmatpush1.msra.mxu0 0.0
    %623 = vmatprep.subr.mxu0 0.0
    %624 = vmatpush1.msra.mxu0 0.0
    %625 = vmatprep.subr.mxu0 0.0
    %626 = vmatpush1.msra.mxu0 0.0
    %627 = vmatprep.subr.mxu0 0.0
    %628 = vmatpush1.msra.mxu0 0.0
    %629 = vmatprep.subr.mxu0 0.0
    %630 = vmatpush1.msra.mxu0 0.0
    %631 = vmatprep.subr.mxu0 0.0
    %632 = vmatpush1.msra.mxu0 0.0
    %633 = vmatprep.subr.mxu0 0.0
    %634 = vmatpush1.msra.mxu0 0.0
    %635 = vmatprep.subr.mxu0 0.0
    %636 = vmatpush1.msra.mxu0 0.0
    %637 = vmatprep.subr.mxu0 0.0
    %638 = vmatpush1.msra.mxu0 0.0
    %639 = vmatprep.subr.mxu0 0.0
    %640 = vmatpush1.msra.mxu0 0.0
    %641 = vmatprep.subr.mxu0 0.0
    %642 = vmatpush1.msra.mxu0 0.0
    %643 = vmatprep.subr.mxu0 0.0
    %644 = vmatpush1.msra.mxu0 0.0
    %645 = vmatprep.subr.mxu0 0.0
    %646 = vmatpush1.msra.mxu0 0.0
    %647 = vmatprep.subr.mxu0 0.0
    %648 = vmatpush1.msra.mxu0 0.0
    %649 = vmatprep.subr.mxu0 0.0
    %650 = vmatpush1.msra.mxu0 0.0
    %651 = vmatprep.subr.mxu0 0.0
    %652 = vmatpush1.msra.mxu0 0.0
    %653 = vmatprep.subr.mxu0 0.0
    %654 = vmatpush1.msra.mxu0 0.0
    %655 = vmatprep.subr.mxu0 0.0
    %656 = vmatpush1.msra.mxu0 0.0
    %657 = vmatprep.subr.mxu0 0.0
    %658 = vmatpush1.msra.mxu0 0.0
    %659 = vmatprep.subr.mxu0 0.0
    %660 = vmatpush1.msra.mxu0 0.0
    %661 = vmatprep.subr.mxu0 0.0
    %662 = vmatpush1.msra.mxu0 0.0
    %663 = vmatprep.subr.mxu0 0.0
    %664 = vmatpush1.msra.mxu0 0.0
    %665 = vmatprep.subr.mxu0 0.0
    %666 = vmatpush1.msra.mxu0 0.0
    %667 = vmatprep.subr.mxu0 0.0
    %668 = vmatpush1.msra.mxu0 0.0
    %669 = vmatprep.subr.mxu0 0.0
    %670 = vmatpush1.msra.mxu0 0.0
    %671 = vmatprep.mubr.f32.mxu0 0.0
    %672 = vmatmul.mubr.f32.gmra.mrb[0].mxu0 %v605
    %v673 = vpop.f32.mrb[0].mxu0
    %v674 = vadd.f32 0.0, %v673
    %v675 = vpop.f32.mrb[0].mxu0
    %v676 = vadd.f32 0.0, %v675
    %677 = vdwg.mxu0
    %v678 = vadd.f32 %v596, %v674
    %v679 = vadd.f32 %v598, %v676
    %v680 = vld [vmem:[%s12] sm:$0x3]
    %v682 = vlaneseq
    %v683 = vshrl.u32 %v682, 7
    %v684 = vsub.s32 0, %v683
    %v685 = vrot.slane %v680, %v684
    %v686 = vlaneseq
    %v687 = vshrl.u32 %v686, 7
    %v688 = vsub.s32 1, %v687
    %v689 = vrot.slane %v680, %v688
    %v692 = vadd.f32 %v678, %v685
    %v693 = vadd.f32 %v679, %v689
    %v694 = vmax.f32 %v692, 0.0
    %v695 = vmax.f32 %v693, 0.0
    %v696 = vld [vmem:[#allocation5] sm:$0xff]
    %v697 = vld [vmem:[#allocation5 + $0x8] sm:$0xff]
    %v698 = vld [vmem:[#allocation5 + $0x10] sm:$0xff]
    %v699 = vld [vmem:[#allocation5 + $0x18] sm:$0xff]
    %v700 = vld [vmem:[#allocation5 + $0x20] sm:$0xff]
    %v701 = vld [vmem:[#allocation5 + $0x28] sm:$0xff]
    %v702 = vld [vmem:[#allocation5 + $0x30] sm:$0xff]
    %v703 = vld [vmem:[#allocation5 + $0x38] sm:$0xff]
    %v704 = vld [vmem:[#allocation5 + $0x40] sm:$0xff]
    %v705 = vld [vmem:[#allocation5 + $0x48] sm:$0xff]
    %v706 = vld [vmem:[#allocation5 + $0x50] sm:$0xff]
    %v707 = vld [vmem:[#allocation5 + $0x58] sm:$0xff]
    %v708 = vld [vmem:[#allocation5 + $0x60] sm:$0xff]
    %v709 = vld [vmem:[#allocation5 + $0x68] sm:$0xff]
    %v710 = vld [vmem:[#allocation5 + $0x70] sm:$0xff]
    %v711 = vld [vmem:[#allocation5 + $0x78] sm:$0xff]
    %v712 = vld [vmem:[#allocation5 + $0x80] sm:$0xff]
    %v713 = vld [vmem:[#allocation5 + $0x88] sm:$0xff]
    %v714 = vld [vmem:[#allocation5 + $0x90] sm:$0xff]
    %v715 = vld [vmem:[#allocation5 + $0x98] sm:$0xff]
    %v716 = vld [vmem:[#allocation5 + $0xa0] sm:$0xff]
    %v717 = vld [vmem:[#allocation5 + $0xa8] sm:$0xff]
    %v718 = vld [vmem:[#allocation5 + $0xb0] sm:$0xff]
    %v719 = vld [vmem:[#allocation5 + $0xb8] sm:$0xff]
    %v720 = vld [vmem:[#allocation5 + $0xc0] sm:$0xff]
    %v721 = vld [vmem:[#allocation5 + $0xc8] sm:$0xff]
    %v722 = vld [vmem:[#allocation5 + $0xd0] sm:$0xff]
    %v723 = vld [vmem:[#allocation5 + $0xd8] sm:$0xff]
    %v724 = vld [vmem:[#allocation5 + $0xe0] sm:$0xff]
    %v725 = vld [vmem:[#allocation5 + $0xe8] sm:$0xff]
    %v726 = vld [vmem:[#allocation5 + $0xf0] sm:$0xff]
    %v727 = vld [vmem:[#allocation5 + $0xf8] sm:$0xff]
    %v728 = vld [vmem:[%s14] sm:$0x1]
    %v730 = vlaneseq
    %v731 = vshrl.u32 %v730, 7
    %v732 = vsub.s32 0, %v731
    %v733 = vrot.slane %v728, %v732
    %735 = vmatprep.subr.mxu0 0.0
    %736 = vmatpush1.msra.mxu0 %v696
    %737 = vmatprep.subr.mxu0 0.0
    %738 = vmatpush1.msra.mxu0 %v697
    %739 = vmatprep.subr.mxu0 0.0
    %740 = vmatpush1.msra.mxu0 %v698
    %741 = vmatprep.subr.mxu0 0.0
    %742 = vmatpush1.msra.mxu0 %v699
    %743 = vmatprep.subr.mxu0 0.0
    %744 = vmatpush1.msra.mxu0 %v700
    %745 = vmatprep.subr.mxu0 0.0
    %746 = vmatpush1.msra.mxu0 %v701
    %747 = vmatprep.subr.mxu0 0.0
    %748 = vmatpush1.msra.mxu0 %v702
    %749 = vmatprep.subr.mxu0 0.0
    %750 = vmatpush1.msra.mxu0 %v703
    %751 = vmatprep.subr.mxu0 0.0
    %752 = vmatpush1.msra.mxu0 %v704
    %753 = vmatprep.subr.mxu0 0.0
    %754 = vmatpush1.msra.mxu0 %v705
    %755 = vmatprep.subr.mxu0 0.0
    %756 = vmatpush1.msra.mxu0 %v706
    %757 = vmatprep.subr.mxu0 0.0
    %758 = vmatpush1.msra.mxu0 %v707
    %759 = vmatprep.subr.mxu0 0.0
    %760 = vmatpush1.msra.mxu0 %v708
    %761 = vmatprep.subr.mxu0 0.0
    %762 = vmatpush1.msra.mxu0 %v709
    %763 = vmatprep.subr.mxu0 0.0
    %764 = vmatpush1.msra.mxu0 %v710
    %765 = vmatprep.subr.mxu0 0.0
    %766 = vmatpush1.msra.mxu0 %v711
    %767 = vmatprep.subr.mxu0 0.0
    %768 = vmatpush1.msra.mxu0 %v712
    %769 = vmatprep.subr.mxu0 0.0
    %770 = vmatpush1.msra.mxu0 %v713
    %771 = vmatprep.subr.mxu0 0.0
    %772 = vmatpush1.msra.mxu0 %v714
    %773 = vmatprep.subr.mxu0 0.0
    %774 = vmatpush1.msra.mxu0 %v715
    %775 = vmatprep.subr.mxu0 0.0
    %776 = vmatpush1.msra.mxu0 %v716
    %777 = vmatprep.subr.mxu0 0.0
    %778 = vmatpush1.msra.mxu0 %v717
    %779 = vmatprep.subr.mxu0 0.0
    %780 = vmatpush1.msra.mxu0 %v718
    %781 = vmatprep.subr.mxu0 0.0
    %782 = vmatpush1.msra.mxu0 %v719
    %783 = vmatprep.subr.mxu0 0.0
    %784 = vmatpush1.msra.mxu0 %v720
    %785 = vmatprep.subr.mxu0 0.0
    %786 = vmatpush1.msra.mxu0 %v721
    %787 = vmatprep.subr.mxu0 0.0
    %788 = vmatpush1.msra.mxu0 %v722
    %789 = vmatprep.subr.mxu0 0.0
    %790 = vmatpush1.msra.mxu0 %v723
    %791 = vmatprep.subr.mxu0 0.0
    %792 = vmatpush1.msra.mxu0 %v724
    %793 = vmatprep.subr.mxu0 0.0
    %794 = vmatpush1.msra.mxu0 %v725
    %795 = vmatprep.subr.mxu0 0.0
    %796 = vmatpush1.msra.mxu0 %v726
    %797 = vmatprep.subr.mxu0 0.0
    %798 = vmatpush1.msra.mxu0 %v727
    %799 = vmatprep.mubr.f32.mxu0 %v695
    %800 = vmatmul.mubr.f32.gmra.mrb[0].mxu0 %v694
    %v801 = vpop.f32.mrb[0].mxu0
    %v802 = vadd.f32 %v733, %v801
    %v803 = vpop.f32.mrb[0].mxu0
    %804 = vdwg.mxu0
    %805 = vst [vmem:[#allocation8] sm:$0x3] %v802
    // Predicated region
    $region58: #{tpu_custom_call.1} parent=1 // pred_check
      _
    $region59: #{tpu_custom_call.1} parent=1 // pred_check_branch
      %807 = sbr.rel (0) target = $region61
    $region60: #{tpu_custom_call.1} parent=1 // pred_region
      %s809 = ssub.s32 32, 32
      %810 = vsyncadd [#allocation7], %s809
      %s812 = sshll.u32 [#allocation8], 4
      %s813 = int_to_ptr.vmem [resolvable:$true] %s812
      %815 = dma.vmem_to_hbm [thread:$0]  %s813, 32, %s15, [#allocation7]
    $region61: #{tpu_custom_call.1} parent=1 // pred_fallthru
      _
    // Predicated region
    $region62: #{tpu_custom_call.1} parent=1 // pred_check
      _
    $region63: #{tpu_custom_call.1} parent=1 // pred_check_branch
      %817 = sbr.rel (0) target = $region65
    $region64: #{tpu_custom_call.1} parent=1 // pred_region
      %818 = dma.done [#allocation7], 32
    $region65: #{tpu_custom_call.1} parent=1 // pred_fallthru
      _
    %819 = vsyncpa [#allocation6], 1
    %820 = vsyncpa [#allocation7], 1

</llo_original>
